<compile_context>
chip_gen: v6e
topology: v6e:2x2x1
jax: 0.10.0
libtpu: 0.0.40
codegen_flags: <defaults>
</compile_context>

<pallas_src>
import functools

import jax
import jax.numpy as jnp
from jax import lax
from jax.experimental import pallas as pl
from jax.experimental.pallas import tpu as pltpu


def _round_up(x, m):
    return ((x + m - 1) // m) * m


def _vmem_limit_bytes():
    """Per-generation scoped-VMEM budget (v7x only has 64 MiB/TC physical)."""
    try:
        kind = jax.devices()[0].device_kind.lower()
    except Exception:
        kind = ""
    if "v6" in kind:
        return 96 * 1024 * 1024          # 128 MiB physical
    if "v5" in kind:
        return 64 * 1024 * 1024          # 128 MiB physical (16 MiB scoped default)
    return 48 * 1024 * 1024              # v7x / unknown: leave headroom of 64 MiB


def _choose_tile(B, C, N, in_bytes, vmem_limit, tile_n):
    """Lane-dense spatial tile (multiple of 128). Target ~0.5M logit elements
    (B*C*tile) per grid step so the ~0.35us per-step overhead is negligible,
    capped so double-buffered inputs + ~6 live f32 (B,C,tile) temporaries fit
    comfortably inside the scoped VMEM budget."""
    if tile_n is not None:
        tile = max(128, _round_up(int(tile_n), 128))
    else:
        tile = _round_up(max(512, (512 * 1024) // max(B * C, 1)), 128)
        per_px = B * C * (2 * in_bytes + 6 * 4) + B * (2 * 4 + 4)
        cap = int((vmem_limit // 2) // max(per_px, 1))
        cap = max(128, (cap // 128) * 128)
        tile = min(tile, cap)
    return min(tile, _round_up(N, 128))


def _lane_chunk_sum(v):
    """Reduce the last (lane) axis of `v` (size k*128) down to 128 lanes using
    only 128-aligned slices + VPU adds; the final 128->1 reduce happens outside
    the kernel."""
    t = v.shape[-1]
    acc = v[..., 0:128]
    for j in range(1, t // 128):
        acc = acc + v[..., j * 128:(j + 1) * 128]
    return acc


def _explog_stats_kernel(x_ref, t_ref, tp_ref, sp_ref, cnt_ref, ce_ref,
                         *, tile_n, tiles_per_shard, n_valid, needs_mask):
    s = pl.program_id(0)          # shard (parallel) axis
    n = pl.program_id(1)          # spatial-tile (arbitrary / reduction) axis

    # ---- init this shard's resident output blocks on its first tile -------
    @pl.when(n == 0)
    def _init():
        tp_ref[...] = jnp.zeros_like(tp_ref)
        sp_ref[...] = jnp.zeros_like(sp_ref)
        cnt_ref[...] = jnp.zeros_like(cnt_ref)
        ce_ref[...] = jnp.zeros_like(ce_ref)

    x = x_ref[...].astype(jnp.float32)            # (B, C, T) logits, f32 in-kernel
    B, C, T = x.shape
    t = t_ref[...]                                # (B, 1, T) int32 labels

    if needs_mask:
        # Ragged last tile and/or phantom tiles: mask the raw logits before
        # exp (stale OOB lanes could hold inf/NaN bit patterns) and make the
        # labels unmatchable.
        tile_idx = s * tiles_per_shard + n
        col = lax.broadcasted_iota(jnp.int32, (1, 1, T), 2)
        valid = (tile_idx * tile_n + col) < n_valid          # (1,1,T) bool
        valid_f = valid.astype(jnp.float32)
        x = jnp.where(valid, x, 0.0)
        t = jnp.where(valid, t, -1)

    # ---- stable channel softmax (softmax_helper, dim=1) -------------------
    x_max = jnp.max(x, axis=1, keepdims=True)     # (B,1,T)
    xs = x - x_max
    e = jnp.exp(xs)
    ssum = jnp.sum(e, axis=1, keepdims=True)      # (B,1,T)
    log_s = jnp.log(ssum)                         # for CE: -logp = log_s - xs[label]
    inv_s = pl.reciprocal(ssum, approx=True)      # EUP vrcp, off the VALU slot
    if needs_mask:
        inv_s = inv_s * valid_f                   # zero p in invalid lanes
        log_s = log_s * valid_f                   # zero CE in invalid lanes
    p = e * inv_s                                 # softmax probabilities

    # ---- per-class selection via selects (no float one-hot multiplies) ----
    cls_ids = lax.broadcasted_iota(jnp.int32, (1, C, 1), 1)
    is_lab = cls_ids == t                         # (B, C, T) bool
    p_sel = jnp.where(is_lab, p, 0.0)
    cnt_f = is_lab.astype(jnp.float32)
    lab = jnp.sum(jnp.where(is_lab, xs, 0.0), axis=1, keepdims=True)  # (B,1,T)
    ce_pix = log_s - lab                          # per-pixel CE (masked)

    # ---- lane-dense partial accumulation (pure VPU adds) -------------------
    tp_ref[...] += _lane_chunk_sum(p_sel)         # (B, C, 128)
    sp_ref[...] += _lane_chunk_sum(p)             # (B, C, 128)
    cnt_ref[...] += _lane_chunk_sum(cnt_f)        # (B, C, 128)
    ce_ref[...] += _lane_chunk_sum(ce_pix)        # (B, 1, 128)


@functools.partial(jax.jit, static_argnames=("gamma", "smooth", "tile_n"))
def explog_loss(net_output, target, gamma=0.3, smooth=1.0, tile_n=None):
    """net_output: (B, C, H, W) float logits (any float dtype),
    target: (B, 1, H, W) or (B, H, W) integer label map."""
    B, C, H, W = net_output.shape
    N = H * W

    x = net_output.reshape(B, C, N)               # native dtype on the wire
    t = target.reshape(B, 1, N).astype(jnp.int32)

    vmem_limit = _vmem_limit_bytes()
    in_bytes = jnp.dtype(net_output.dtype).itemsize
    tile = _choose_tile(B, C, N, in_bytes, vmem_limit, tile_n)

    num_tiles = pl.cdiv(N, tile)
    num_shards = 2 if num_tiles >= 2 else 1       # split N across v7x's 2 TCs
    tiles_per_shard = pl.cdiv(num_tiles, num_shards)
    has_phantom = num_shards * tiles_per_shard != num_tiles
    needs_mask = has_phantom or (N % tile != 0)
    last_blk = num_tiles - 1

    def in_idx(s, n):
        blk = s * tiles_per_shard + n
        if has_phantom:
            blk = jnp.minimum(blk, last_blk)      # phantom tiles reload last block
        return (0, 0, blk)

    def out_idx(s, n):
        return (s, 0, 0, 0)

    kernel = functools.partial(
        _explog_stats_kernel,
        tile_n=tile, tiles_per_shard=tiles_per_shard,
        n_valid=N, needs_mask=needs_mask)

    tp_p, sp_p, cnt_p, ce_p = pl.pallas_call(
        kernel,
        out_shape=(
            jax.ShapeDtypeStruct((num_shards, B, C, 128), jnp.float32),  # tp
            jax.ShapeDtypeStruct((num_shards, B, C, 128), jnp.float32),  # sum(p)
            jax.ShapeDtypeStruct((num_shards, B, C, 128), jnp.float32),  # count
            jax.ShapeDtypeStruct((num_shards, B, 1, 128), jnp.float32),  # CE sum
        ),
        grid_spec=pltpu.PrefetchScalarGridSpec(
            num_scalar_prefetch=0,
            grid=(num_shards, tiles_per_shard),
            in_specs=[
                pl.BlockSpec((B, C, tile), in_idx),
                pl.BlockSpec((B, 1, tile), in_idx),
            ],
            out_specs=[
                pl.BlockSpec((None, B, C, 128), out_idx),
                pl.BlockSpec((None, B, C, 128), out_idx),
                pl.BlockSpec((None, B, C, 128), out_idx),
                pl.BlockSpec((None, B, 1, 128), out_idx),
            ]),
        compiler_params=pltpu.CompilerParams(
            dimension_semantics=("parallel", "arbitrary"),
            vmem_limit_bytes=vmem_limit),
    )(x, t)

    # ---- tiny dice / CE finalize in JAX (per-shard + 128-lane partials) ----
    tp = jnp.sum(tp_p, axis=(0, 3))                       # (B, C)
    sp = jnp.sum(sp_p, axis=(0, 3))
    cnt = jnp.sum(cnt_p, axis=(0, 3))
    ce_mean = jnp.sum(ce_p) / float(B * N)

    # fp = sp - tp, fn = cnt - tp  =>  2tp + fp + fn = sp + cnt
    dc = (2.0 * tp + smooth) / (sp + cnt + smooth)
    dc_mean = jnp.mean(dc)
    dcl = jnp.maximum(dc_mean, 1e-6)                      # torch.clamp(dc_loss, 1e-6)
    return 0.8 * jnp.power(-jnp.log(dcl), gamma) + 0.2 * ce_mean


def explog_loss_ref(net_output, target, gamma=0.3, smooth=1.0):
    """Pure-JAX reference mirroring the PyTorch ExpLog_loss forward."""
    B, C, H, W = net_output.shape
    xf = net_output.astype(jnp.float32)
    p = jax.nn.softmax(xf, axis=1)
    onehot = jax.nn.one_hot(target.reshape(B, H, W), C, axis=1, dtype=jnp.float32)
    tp = jnp.sum(p * onehot, axis=(2, 3))
    fp = jnp.sum(p * (1.0 - onehot), axis=(2, 3))
    fn = jnp.sum((1.0 - p) * onehot, axis=(2, 3))
    dc = (2.0 * tp + smooth) / (2.0 * tp + fp + fn + smooth)
    dc_mean = jnp.mean(dc)
    logp = jax.nn.log_softmax(xf, axis=1)
    wce = -jnp.mean(jnp.sum(onehot * logp, axis=1))
    return 0.8 * jnp.power(-jnp.log(jnp.maximum(dc_mean, 1e-6)), gamma) + 0.2 * wce


if __name__ == "__main__":
    key = jax.random.PRNGKey(0)
    k1, k2, k3, k4, k5, k6 = jax.random.split(key, 6)
    # approx reciprocal (EUP vrcp) introduces ~1e-4 relative deviation in p
    ATOL = RTOL = 5e-4

    # Test 1: f32 logits, exact tiling -> 2 shards x 1 tile (parallel axis path)
    B, C, H, W = 2, 4, 16, 16
    x1 = jax.random.normal(k1, (B, C, H, W), dtype=jnp.float32)
    t1 = jax.random.randint(k2, (B, 1, H, W), 0, C, dtype=jnp.int32)
    loss1 = explog_loss(x1, t1, tile_n=128)
    jax.block_until_ready(loss1)
    ref1 = explog_loss_ref(x1, t1)
    assert jnp.allclose(loss1, ref1, atol=ATOL, rtol=RTOL), (loss1, ref1)

    # Test 2: bf16 logits, ragged N=270 -> 3 real tiles, 2 shards x 2 tiles
    # (exercises ragged masking, phantom-tile clamp, multi-tile accumulation)
    B, C, H, W = 2, 4, 15, 18
    x2 = jax.random.normal(k3, (B, C, H, W), dtype=jnp.bfloat16)
    t2 = jax.random.randint(k4, (B, 1, H, W), 0, C, dtype=jnp.int32)
    loss2 = explog_loss(x2, t2, tile_n=128)
    jax.block_until_ready(loss2)
    ref2 = explog_loss_ref(x2, t2)
    assert jnp.allclose(loss2, ref2, atol=ATOL, rtol=RTOL), (loss2, ref2)

    # Test 3: auto tile sizing, non-power-of-two class count
    B, C, H, W = 2, 5, 24, 32
    x3 = jax.random.normal(k5, (B, C, H, W), dtype=jnp.float32)
    t3 = jax.random.randint(k6, (B, 1, H, W), 0, C, dtype=jnp.int32)
    loss3 = explog_loss(x3, t3)
    jax.block_until_ready(loss3)
    ref3 = explog_loss_ref(x3, t3)
    assert jnp.allclose(loss3, ref3, atol=ATOL, rtol=RTOL), (loss3, ref3)

    print("KERNEL_OK")
</pallas_src>

<mosaic_0001>
module attributes {stable_mosaic.version = 11 : i64} {
  func.func @_explog_stats_kernel(%arg0: i32, %arg1: i32, %arg2: memref<2x4x128xf32, #tpu.memory_space<vmem>>, %arg3: memref<2x1x128xi32, #tpu.memory_space<vmem>>, %arg4: memref<1x2x4x128xf32, #tpu.memory_space<vmem>>, %arg5: memref<1x2x4x128xf32, #tpu.memory_space<vmem>>, %arg6: memref<1x2x4x128xf32, #tpu.memory_space<vmem>>, %arg7: memref<1x2x1x128xf32, #tpu.memory_space<vmem>>) attributes {dimension_semantics = [#tpu.dimension_semantics<parallel>, #tpu.dimension_semantics<arbitrary>], iteration_bounds = array<i64: 2, 1>, scalar_prefetch = 0 : i64, scratch_operands = 0 : i64, tpu.core_type = #tpu.core_type<tc>, window_params = [{transform_indices = @transform_0, window_bounds = array<i64: 2, 4, 128>}, {transform_indices = @transform_1, window_bounds = array<i64: 2, 1, 128>}, {transform_indices = @transform_2, window_bounds = array<i64: 1, 2, 4, 128>}, {transform_indices = @transform_3, window_bounds = array<i64: 1, 2, 4, 128>}, {transform_indices = @transform_4, window_bounds = array<i64: 1, 2, 4, 128>}, {transform_indices = @transform_5, window_bounds = array<i64: 1, 2, 1, 128>}]} {
    %c0_i32 = arith.constant 0 : i32
    %0 = arith.cmpi eq, %arg1, %c0_i32 : i32
    %1 = arith.extui %0 : i1 to i32
    %c0_i32_0 = arith.constant 0 : i32
    %2 = arith.cmpi ne, %1, %c0_i32_0 : i32
    scf.if %2 {
      %cst_42 = arith.constant 0.000000e+00 : f32
      %53 = vector.broadcast %cst_42 : f32 to vector<2x4x128xf32>
      %c0_43 = arith.constant 0 : index
      %c0_44 = arith.constant 0 : index
      %c0_45 = arith.constant 0 : index
      %c0_46 = arith.constant 0 : index
      %54 = vector.load %arg4[%c0_43, %c0_44, %c0_45, %c0_46] : memref<1x2x4x128xf32, #tpu.memory_space<vmem>>, vector<1x2x4x128xf32>
      %55 = vector.shape_cast %54 : vector<1x2x4x128xf32> to vector<2x4x128xf32>
      %56 = vector.shape_cast %53 : vector<2x4x128xf32> to vector<1x2x4x128xf32>
      tpu.vector_store %arg4[%c0_43, %c0_44, %c0_45, %c0_46], %56 {strides = array<i32>} : memref<1x2x4x128xf32, #tpu.memory_space<vmem>>, vector<1x2x4x128xf32>,
      %cst_47 = arith.constant 0.000000e+00 : f32
      %57 = vector.broadcast %cst_47 : f32 to vector<2x4x128xf32>
      %c0_48 = arith.constant 0 : index
      %c0_49 = arith.constant 0 : index
      %c0_50 = arith.constant 0 : index
      %c0_51 = arith.constant 0 : index
      %58 = vector.load %arg5[%c0_48, %c0_49, %c0_50, %c0_51] : memref<1x2x4x128xf32, #tpu.memory_space<vmem>>, vector<1x2x4x128xf32>
      %59 = vector.shape_cast %58 : vector<1x2x4x128xf32> to vector<2x4x128xf32>
      %60 = vector.shape_cast %57 : vector<2x4x128xf32> to vector<1x2x4x128xf32>
      tpu.vector_store %arg5[%c0_48, %c0_49, %c0_50, %c0_51], %60 {strides = array<i32>} : memref<1x2x4x128xf32, #tpu.memory_space<vmem>>, vector<1x2x4x128xf32>,
      %cst_52 = arith.constant 0.000000e+00 : f32
      %61 = vector.broadcast %cst_52 : f32 to vector<2x4x128xf32>
      %c0_53 = arith.constant 0 : index
      %c0_54 = arith.constant 0 : index
      %c0_55 = arith.constant 0 : index
      %c0_56 = arith.constant 0 : index
      %62 = vector.load %arg6[%c0_53, %c0_54, %c0_55, %c0_56] : memref<1x2x4x128xf32, #tpu.memory_space<vmem>>, vector<1x2x4x128xf32>
      %63 = vector.shape_cast %62 : vector<1x2x4x128xf32> to vector<2x4x128xf32>
      %64 = vector.shape_cast %61 : vector<2x4x128xf32> to vector<1x2x4x128xf32>
      tpu.vector_store %arg6[%c0_53, %c0_54, %c0_55, %c0_56], %64 {strides = array<i32>} : memref<1x2x4x128xf32, #tpu.memory_space<vmem>>, vector<1x2x4x128xf32>,
      %cst_57 = arith.constant 0.000000e+00 : f32
      %65 = vector.broadcast %cst_57 : f32 to vector<2x1x128xf32>
      %c0_58 = arith.constant 0 : index
      %c0_59 = arith.constant 0 : index
      %c0_60 = arith.constant 0 : index
      %c0_61 = arith.constant 0 : index
      %66 = vector.load %arg7[%c0_58, %c0_59, %c0_60, %c0_61] : memref<1x2x1x128xf32, #tpu.memory_space<vmem>>, vector<1x2x1x128xf32>
      %67 = vector.shape_cast %66 : vector<1x2x1x128xf32> to vector<2x1x128xf32>
      %68 = vector.shape_cast %65 : vector<2x1x128xf32> to vector<1x2x1x128xf32>
      tpu.vector_store %arg7[%c0_58, %c0_59, %c0_60, %c0_61], %68 {strides = array<i32>} : memref<1x2x1x128xf32, #tpu.memory_space<vmem>>, vector<1x2x1x128xf32>,
    } else {
    }
    %c0 = arith.constant 0 : index
    %c0_1 = arith.constant 0 : index
    %c0_2 = arith.constant 0 : index
    %3 = vector.load %arg2[%c0, %c0_1, %c0_2] : memref<2x4x128xf32, #tpu.memory_space<vmem>>, vector<2x4x128xf32>
    %c0_3 = arith.constant 0 : index
    %c0_4 = arith.constant 0 : index
    %c0_5 = arith.constant 0 : index
    %4 = vector.load %arg3[%c0_3, %c0_4, %c0_5] : memref<2x1x128xi32, #tpu.memory_space<vmem>>, vector<2x1x128xi32>
    %cst = arith.constant dense<0xFF800000> : vector<2x128xf32>
    %5 = vector.multi_reduction <maximumf>, %3, %cst [1] : vector<2x4x128xf32> to vector<2x128xf32>
    %6 = vector.shape_cast %5 : vector<2x128xf32> to vector<2x1x128xf32>
    %7 = vector.broadcast %6 : vector<2x1x128xf32> to vector<2x4x128xf32>
    %8 = arith.subf %3, %7 : vector<2x4x128xf32>
    %9 = math.exp %8 : vector<2x4x128xf32>
    %cst_6 = arith.constant dense<0.000000e+00> : vector<2x128xf32>
    %10 = vector.multi_reduction <add>, %9, %cst_6 [1] : vector<2x4x128xf32> to vector<2x128xf32>
    %11 = vector.shape_cast %10 : vector<2x128xf32> to vector<2x1x128xf32>
    %12 = math.log %11 : vector<2x1x128xf32>
    %13 = tpu.reciprocal %11 {approx = true} : vector<2x1x128xf32> -> vector<2x1x128xf32>
    %14 = vector.broadcast %13 : vector<2x1x128xf32> to vector<2x4x128xf32>
    %15 = arith.mulf %9, %14 : vector<2x4x128xf32>
    %16 = tpu.iota {dimensions = array<i32: 1>} : vector<1x4x1xi32>
    %17 = vector.broadcast %16 : vector<1x4x1xi32> to vector<2x4x128xi32>
    %18 = vector.broadcast %4 : vector<2x1x128xi32> to vector<2x4x128xi32>
    %19 = arith.cmpi eq, %17, %18 : vector<2x4x128xi32>
    %cst_7 = arith.constant 0.000000e+00 : f32
    %20 = vector.broadcast %cst_7 : f32 to vector<2x4x128xf32>
    %21 = arith.select %19, %15, %20 : vector<2x4x128xi1>, vector<2x4x128xf32>
    %22 = arith.extui %19 : vector<2x4x128xi1> to vector<2x4x128xi32>
    %23 = arith.sitofp %22 : vector<2x4x128xi32> to vector<2x4x128xf32>
    %cst_8 = arith.constant 0.000000e+00 : f32
    %24 = vector.broadcast %cst_8 : f32 to vector<2x4x128xf32>
    %25 = arith.select %19, %8, %24 : vector<2x4x128xi1>, vector<2x4x128xf32>
    %cst_9 = arith.constant dense<0.000000e+00> : vector<2x128xf32>
    %26 = vector.multi_reduction <add>, %25, %cst_9 [1] : vector<2x4x128xf32> to vector<2x128xf32>
    %27 = vector.shape_cast %26 : vector<2x128xf32> to vector<2x1x128xf32>
    %28 = arith.subf %12, %27 : vector<2x1x128xf32>
    %c0_10 = arith.constant 0 : index
    %c0_11 = arith.constant 0 : index
    %c0_12 = arith.constant 0 : index
    %c0_13 = arith.constant 0 : index
    %29 = vector.load %arg4[%c0_10, %c0_11, %c0_12, %c0_13] : memref<1x2x4x128xf32, #tpu.memory_space<vmem>>, vector<1x2x4x128xf32>
    %30 = vector.shape_cast %29 : vector<1x2x4x128xf32> to vector<2x4x128xf32>
    %31 = arith.addf %30, %21 : vector<2x4x128xf32>
    %c0_14 = arith.constant 0 : index
    %c0_15 = arith.constant 0 : index
    %c0_16 = arith.constant 0 : index
    %c0_17 = arith.constant 0 : index
    %32 = vector.load %arg4[%c0_14, %c0_15, %c0_16, %c0_17] : memref<1x2x4x128xf32, #tpu.memory_space<vmem>>, vector<1x2x4x128xf32>
    %33 = vector.shape_cast %32 : vector<1x2x4x128xf32> to vector<2x4x128xf32>
    %34 = vector.shape_cast %31 : vector<2x4x128xf32> to vector<1x2x4x128xf32>
    tpu.vector_store %arg4[%c0_14, %c0_15, %c0_16, %c0_17], %34 {strides = array<i32>} : memref<1x2x4x128xf32, #tpu.memory_space<vmem>>, vector<1x2x4x128xf32>,
    %c0_18 = arith.constant 0 : index
    %c0_19 = arith.constant 0 : index
    %c0_20 = arith.constant 0 : index
    %c0_21 = arith.constant 0 : index
    %35 = vector.load %arg5[%c0_18, %c0_19, %c0_20, %c0_21] : memref<1x2x4x128xf32, #tpu.memory_space<vmem>>, vector<1x2x4x128xf32>
    %36 = vector.shape_cast %35 : vector<1x2x4x128xf32> to vector<2x4x128xf32>
    %37 = arith.addf %36, %15 : vector<2x4x128xf32>
    %c0_22 = arith.constant 0 : index
    %c0_23 = arith.constant 0 : index
    %c0_24 = arith.constant 0 : index
    %c0_25 = arith.constant 0 : index
    %38 = vector.load %arg5[%c0_22, %c0_23, %c0_24, %c0_25] : memref<1x2x4x128xf32, #tpu.memory_space<vmem>>, vector<1x2x4x128xf32>
    %39 = vector.shape_cast %38 : vector<1x2x4x128xf32> to vector<2x4x128xf32>
    %40 = vector.shape_cast %37 : vector<2x4x128xf32> to vector<1x2x4x128xf32>
    tpu.vector_store %arg5[%c0_22, %c0_23, %c0_24, %c0_25], %40 {strides = array<i32>} : memref<1x2x4x128xf32, #tpu.memory_space<vmem>>, vector<1x2x4x128xf32>,
    %c0_26 = arith.constant 0 : index
    %c0_27 = arith.constant 0 : index
    %c0_28 = arith.constant 0 : index
    %c0_29 = arith.constant 0 : index
    %41 = vector.load %arg6[%c0_26, %c0_27, %c0_28, %c0_29] : memref<1x2x4x128xf32, #tpu.memory_space<vmem>>, vector<1x2x4x128xf32>
    %42 = vector.shape_cast %41 : vector<1x2x4x128xf32> to vector<2x4x128xf32>
    %43 = arith.addf %42, %23 : vector<2x4x128xf32>
    %c0_30 = arith.constant 0 : index
    %c0_31 = arith.constant 0 : index
    %c0_32 = arith.constant 0 : index
    %c0_33 = arith.constant 0 : index
    %44 = vector.load %arg6[%c0_30, %c0_31, %c0_32, %c0_33] : memref<1x2x4x128xf32, #tpu.memory_space<vmem>>, vector<1x2x4x128xf32>
    %45 = vector.shape_cast %44 : vector<1x2x4x128xf32> to vector<2x4x128xf32>
    %46 = vector.shape_cast %43 : vector<2x4x128xf32> to vector<1x2x4x128xf32>
    tpu.vector_store %arg6[%c0_30, %c0_31, %c0_32, %c0_33], %46 {strides = array<i32>} : memref<1x2x4x128xf32, #tpu.memory_space<vmem>>, vector<1x2x4x128xf32>,
    %c0_34 = arith.constant 0 : index
    %c0_35 = arith.constant 0 : index
    %c0_36 = arith.constant 0 : index
    %c0_37 = arith.constant 0 : index
    %47 = vector.load %arg7[%c0_34, %c0_35, %c0_36, %c0_37] : memref<1x2x1x128xf32, #tpu.memory_space<vmem>>, vector<1x2x1x128xf32>
    %48 = vector.shape_cast %47 : vector<1x2x1x128xf32> to vector<2x1x128xf32>
    %49 = arith.addf %48, %28 : vector<2x1x128xf32>
    %c0_38 = arith.constant 0 : index
    %c0_39 = arith.constant 0 : index
    %c0_40 = arith.constant 0 : index
    %c0_41 = arith.constant 0 : index
    %50 = vector.load %arg7[%c0_38, %c0_39, %c0_40, %c0_41] : memref<1x2x1x128xf32, #tpu.memory_space<vmem>>, vector<1x2x1x128xf32>
    %51 = vector.shape_cast %50 : vector<1x2x1x128xf32> to vector<2x1x128xf32>
    %52 = vector.shape_cast %49 : vector<2x1x128xf32> to vector<1x2x1x128xf32>
    tpu.vector_store %arg7[%c0_38, %c0_39, %c0_40, %c0_41], %52 {strides = array<i32>} : memref<1x2x1x128xf32, #tpu.memory_space<vmem>>, vector<1x2x1x128xf32>,
    return
  }
  func.func @transform_0(%arg0: i32, %arg1: i32) -> (i32, i32, i32) {
    %c1_i32 = arith.constant 1 : i32
    %0 = arith.muli %arg0, %c1_i32 : i32
    %1 = arith.addi %0, %arg1 : i32
    %c0_i32 = arith.constant 0 : i32
    %c0_i32_0 = arith.constant 0 : i32
    %c0_i32_1 = arith.constant 0 : i32
    return %c0_i32, %c0_i32_0, %1 : i32, i32, i32
  }
  func.func @transform_1(%arg0: i32, %arg1: i32) -> (i32, i32, i32) {
    %c1_i32 = arith.constant 1 : i32
    %0 = arith.muli %arg0, %c1_i32 : i32
    %1 = arith.addi %0, %arg1 : i32
    %c0_i32 = arith.constant 0 : i32
    %c0_i32_0 = arith.constant 0 : i32
    %c0_i32_1 = arith.constant 0 : i32
    return %c0_i32, %c0_i32_0, %1 : i32, i32, i32
  }
  func.func @transform_2(%arg0: i32, %arg1: i32) -> (i32, i32, i32, i32) {
    %c0_i32 = arith.constant 0 : i32
    %c0_i32_0 = arith.constant 0 : i32
    %c0_i32_1 = arith.constant 0 : i32
    %c0_i32_2 = arith.constant 0 : i32
    return %arg0, %c0_i32, %c0_i32_0, %c0_i32_1 : i32, i32, i32, i32
  }
  func.func @transform_3(%arg0: i32, %arg1: i32) -> (i32, i32, i32, i32) {
    %c0_i32 = arith.constant 0 : i32
    %c0_i32_0 = arith.constant 0 : i32
    %c0_i32_1 = arith.constant 0 : i32
    %c0_i32_2 = arith.constant 0 : i32
    return %arg0, %c0_i32, %c0_i32_0, %c0_i32_1 : i32, i32, i32, i32
  }
  func.func @transform_4(%arg0: i32, %arg1: i32) -> (i32, i32, i32, i32) {
    %c0_i32 = arith.constant 0 : i32
    %c0_i32_0 = arith.constant 0 : i32
    %c0_i32_1 = arith.constant 0 : i32
    %c0_i32_2 = arith.constant 0 : i32
    return %arg0, %c0_i32, %c0_i32_0, %c0_i32_1 : i32, i32, i32, i32
  }
  func.func @transform_5(%arg0: i32, %arg1: i32) -> (i32, i32, i32, i32) {
    %c0_i32 = arith.constant 0 : i32
    %c0_i32_0 = arith.constant 0 : i32
    %c0_i32_1 = arith.constant 0 : i32
    %c0_i32_2 = arith.constant 0 : i32
    return %arg0, %c0_i32, %c0_i32_0, %c0_i32_1 : i32, i32, i32, i32
  }
}

</mosaic_0001>

<llo_original>
// kernel: explog_loss.1
$region0: #{explog_loss.1}
  #allocation0 [shape = 'u32[]', space=smem, size = 0x4, offset = 0x4, fixed_abs, tag = 'smem constant byte address 0x4 - core index']
  #allocation1 [shape = 'u32[144,128]{1,0:T(1,128)}', space=vmem, size = 0x12000, scoped, tag = 'internal scratch']
  %s0 = inlined_call_operand.vmem [shape: f32[2,4,256], index: 0, kind: input, shape index: {}]
  %s1 = inlined_call_operand.vmem [shape: s32[2,1,256], index: 1, kind: input, shape index: {}]
  %s2 = inlined_call_operand.vmem [shape: f32[2,2,4,128], index: 2, kind: output, shape index: {0}]
  %s3 = inlined_call_operand.vmem [shape: f32[2,2,4,128], index: 3, kind: output, shape index: {1}]
  %s4 = inlined_call_operand.vmem [shape: f32[2,2,4,128], index: 4, kind: output, shape index: {2}]
  %s5 = inlined_call_operand.vmem [shape: f32[2,2,1,128], index: 5, kind: output, shape index: {3}]
  %6 = xla_tuple %s2, %s3, %s4, %s5
  %s7 = sld [smem:[#allocation0]]
  $region144: #{explog_loss.1} parent=0
    _
  %s9 = ssub.s32 1, %s7
  %s10 = scalar_select 0, %s9, %s7
  $region1: #{explog_loss.1} parent=0
    #allocation2 [shape = 'u8[8192]{0}', space=vmem, size = 0x2000, scoped, tag = 'input window, operand 0']
    #allocation3 [shape = 'u8[2048]{0}', space=vmem, size = 0x800, scoped, tag = 'input window, operand 1']
    loop: start=0, step=1, limit=4
    $region2: #{explog_loss.1} parent=1 // loop_pre_header
      _
    $region3: #{explog_loss.1} parent=1 // loop_header
      %s12 = sphi 0, %s16
      %p13 = scmp.ge.s32.totalorder %s12, 4
      %s19 = sphi 0, %s31
      %s20 = sphi 0, %s27
      %s21 = sphi 0, %s19
      %s22 = sphi 0, %s20
      %s23 = sphi 0, %s21
      %s24 = sphi 0, %s22
      %s36 = sphi 0, %s38
      %s39 = sphi 0, %s36
      %s40 = sphi 0, %s39
      %s56 = sphi 0, %s40
      %s64 = sphi 0, %s66
      %s67 = sphi 0, %s64
      %s68 = sphi 0, %s67
      %s84 = sphi 0, %s68
      %s90 = sphi 0, %s92
      %s93 = sphi 0, %s90
      %s94 = sphi 0, %s93
      %s110 = sphi 0, %s94
      %s116 = sphi 0, %s118
      %s119 = sphi 0, %s116
      %s120 = sphi 0, %s119
      %s136 = sphi 0, %s120
      %s142 = sphi 0, %s144
      %s145 = sphi 0, %s142
      %s146 = sphi 0, %s145
      %s162 = sphi 0, %s146
      %s168 = sphi 0, %s170
      %s171 = sphi 0, %s168
      %s172 = sphi 0, %s171
      %s188 = sphi 0, %s172
    $region4: #{explog_loss.1} parent=1 // loop_header_branch
      %15 = sbr.rel (%p13) target = $region8
    $region5: #{explog_loss.1} parent=1 // loop_body
      %s17 = ssub.s32 %s12, 1
      %s18 = ssub.s32 %s12, 2
      %s25 = sadd.s32 1, %s20
      %p26 = scmp.ge.s32.totalorder %s25, 1
      %s27 = scalar_select %p26, 0, %s25
      %s28 = sadd.s32 1, %s19
      %s29 = scalar_select %p26, %s28, %s19
      %p30 = scmp.ge.s32.totalorder %s29, 2
      %s31 = scalar_select %p30, 0, %s29
      %s32 = sadd.s32 %s19, %s20
      %s33 = sadd.s32 %s31, %s27
      %s34 = ssub.s32 %s32, %s33
      %p35 = scmp.eq.s32.totalorder %s34, 0
      %s37 = sadd.s32 %s36, 1
      %s38 = scalar_select %p35, %s36, %s37
      %p41 = pneg %p35
      %p42 = scmp.eq.s32.totalorder %s12, 1
      %p43 = por %p41, %p42
      %p44 = scmp.ne.s32.totalorder %s36, %s39
      %p45 = scmp.eq.s32.totalorder %s12, 0
      %p46 = por %p44, %p45
      %p47 = scmp.ne.s32.totalorder %s36, %s39
      %p48 = scmp.eq.s32.totalorder %s17, 1
      %p49 = por %p47, %p48
      %p50 = scmp.ne.s32.totalorder %s39, %s40
      %p51 = scmp.eq.s32.totalorder %s17, 0
      %p52 = por %p50, %p51
      %p53 = scmp.ne.s32.totalorder %s39, %s40
      %p54 = scmp.eq.s32.totalorder %s18, 1
      %p55 = por %p53, %p54
      %p57 = scmp.ne.s32.totalorder %s40, %s56
      %p58 = scmp.eq.s32.totalorder %s18, 0
      %p59 = por %p57, %p58
      %s60 = sadd.s32 %s19, %s20
      %s61 = sadd.s32 %s31, %s27
      %s62 = ssub.s32 %s60, %s61
      %p63 = scmp.eq.s32.totalorder %s62, 0
      %s65 = sadd.s32 %s64, 1
      %s66 = scalar_select %p63, %s64, %s65
      %p69 = pneg %p63
      %p70 = scmp.eq.s32.totalorder %s12, 1
      %p71 = por %p69, %p70
      %p72 = scmp.ne.s32.totalorder %s64, %s67
      %p73 = scmp.eq.s32.totalorder %s12, 0
      %p74 = por %p72, %p73
      %p75 = scmp.ne.s32.totalorder %s64, %s67
      %p76 = scmp.eq.s32.totalorder %s17, 1
      %p77 = por %p75, %p76
      %p78 = scmp.ne.s32.totalorder %s67, %s68
      %p79 = scmp.eq.s32.totalorder %s17, 0
      %p80 = por %p78, %p79
      %p81 = scmp.ne.s32.totalorder %s67, %s68
      %p82 = scmp.eq.s32.totalorder %s18, 1
      %p83 = por %p81, %p82
      %p85 = scmp.ne.s32.totalorder %s68, %s84
      %p86 = scmp.eq.s32.totalorder %s18, 0
      %p87 = por %p85, %p86
      %s88 = ssub.s32 %s19, %s31
      %p89 = scmp.eq.s32.totalorder %s88, 0
      %s91 = sadd.s32 %s90, 1
      %s92 = scalar_select %p89, %s90, %s91
      %p95 = pneg %p89
      %p96 = scmp.eq.s32.totalorder %s12, 1
      %p97 = por %p95, %p96
      %p98 = scmp.ne.s32.totalorder %s90, %s93
      %p99 = scmp.eq.s32.totalorder %s12, 0
      %p100 = por %p98, %p99
      %p101 = scmp.ne.s32.totalorder %s90, %s93
      %p102 = scmp.eq.s32.totalorder %s17, 1
      %p103 = por %p101, %p102
      %p104 = scmp.ne.s32.totalorder %s93, %s94
      %p105 = scmp.eq.s32.totalorder %s17, 0
      %p106 = por %p104, %p105
      %p107 = scmp.ne.s32.totalorder %s93, %s94
      %p108 = scmp.eq.s32.totalorder %s18, 1
      %p109 = por %p107, %p108
      %p111 = scmp.ne.s32.totalorder %s94, %s110
      %p112 = scmp.eq.s32.totalorder %s18, 0
      %p113 = por %p111, %p112
      %s114 = ssub.s32 %s19, %s31
      %p115 = scmp.eq.s32.totalorder %s114, 0
      %s117 = sadd.s32 %s116, 1
      %s118 = scalar_select %p115, %s116, %s117
      %p121 = pneg %p115
      %p122 = scmp.eq.s32.totalorder %s12, 1
      %p123 = por %p121, %p122
      %p124 = scmp.ne.s32.totalorder %s116, %s119
      %p125 = scmp.eq.s32.totalorder %s12, 0
      %p126 = por %p124, %p125
      %p127 = scmp.ne.s32.totalorder %s116, %s119
      %p128 = scmp.eq.s32.totalorder %s17, 1
      %p129 = por %p127, %p128
      %p130 = scmp.ne.s32.totalorder %s119, %s120
      %p131 = scmp.eq.s32.totalorder %s17, 0
      %p132 = por %p130, %p131
      %p133 = scmp.ne.s32.totalorder %s119, %s120
      %p134 = scmp.eq.s32.totalorder %s18, 1
      %p135 = por %p133, %p134
      %p137 = scmp.ne.s32.totalorder %s120, %s136
      %p138 = scmp.eq.s32.totalorder %s18, 0
      %p139 = por %p137, %p138
      %s140 = ssub.s32 %s19, %s31
      %p141 = scmp.eq.s32.totalorder %s140, 0
      %s143 = sadd.s32 %s142, 1
      %s144 = scalar_select %p141, %s142, %s143
      %p147 = pneg %p141
      %p148 = scmp.eq.s32.totalorder %s12, 1
      %p149 = por %p147, %p148
      %p150 = scmp.ne.s32.totalorder %s142, %s145
      %p151 = scmp.eq.s32.totalorder %s12, 0
      %p152 = por %p150, %p151
      %p153 = scmp.ne.s32.totalorder %s142, %s145
      %p154 = scmp.eq.s32.totalorder %s17, 1
      %p155 = por %p153, %p154
      %p156 = scmp.ne.s32.totalorder %s145, %s146
      %p157 = scmp.eq.s32.totalorder %s17, 0
      %p158 = por %p156, %p157
      %p159 = scmp.ne.s32.totalorder %s145, %s146
      %p160 = scmp.eq.s32.totalorder %s18, 1
      %p161 = por %p159, %p160
      %p163 = scmp.ne.s32.totalorder %s146, %s162
      %p164 = scmp.eq.s32.totalorder %s18, 0
      %p165 = por %p163, %p164
      %s166 = ssub.s32 %s19, %s31
      %p167 = scmp.eq.s32.totalorder %s166, 0
      %s169 = sadd.s32 %s168, 1
      %s170 = scalar_select %p167, %s168, %s169
      %p173 = pneg %p167
      %p174 = scmp.eq.s32.totalorder %s12, 1
      %p175 = por %p173, %p174
      %p176 = scmp.ne.s32.totalorder %s168, %s171
      %p177 = scmp.eq.s32.totalorder %s12, 0
      %p178 = por %p176, %p177
      %p179 = scmp.ne.s32.totalorder %s168, %s171
      %p180 = scmp.eq.s32.totalorder %s17, 1
      %p181 = por %p179, %p180
      %p182 = scmp.ne.s32.totalorder %s171, %s172
      %p183 = scmp.eq.s32.totalorder %s17, 0
      %p184 = por %p182, %p183
      %p185 = scmp.ne.s32.totalorder %s171, %s172
      %p186 = scmp.eq.s32.totalorder %s18, 1
      %p187 = por %p185, %p186
      %p189 = scmp.ne.s32.totalorder %s172, %s188
      %p190 = scmp.eq.s32.totalorder %s18, 0
      %p191 = por %p189, %p190
      %p192 = scmp.le.s32.totalorder 1, %s12
      %p193 = scmp.lt.s32.totalorder %s12, 3
      %p194 = pnand %p192, %p193
      %p195 = pneg %p194
      // Predicated region
      $region9: #{explog_loss.1} parent=5 // pred_check
        _
      $region10: #{explog_loss.1} parent=5 // pred_check_branch
        %197 = sbr.rel (%p194) target = $region12
      $region11: #{explog_loss.1} parent=5 // pred_region
        %s198 = ssub.s32 %s12, 1
      $region12: #{explog_loss.1} parent=5 // pred_fallthru
        _
      %p199 = scmp.lt.s32.totalorder %s12, 2
      // Predicated region
      $region13: #{explog_loss.1} parent=5 // pred_check
        %p200 = pneg %p199
      $region14: #{explog_loss.1} parent=5 // pred_check_branch
        %202 = sbr.rel (%p200) target = $region16
      $region15: #{explog_loss.1} parent=5 // pred_region
        // Predicated region
        $region17: #{explog_loss.1} parent=15 // pred_check
          %p203 = pneg %p46
        $region18: #{explog_loss.1} parent=15 // pred_check_branch
          %205 = sbr.rel (%p203) target = $region20
        $region19: #{explog_loss.1} parent=15 // pred_region
          %s206 = sand.u32 %s36, 1
          %s207 = sand.u32 %s36, 1
          %s208 = smul.addr %s207, 8
          %s209 = scalar_lea.vmem [#allocation2], %s208
          %s210 = sadd.s32 %s19, %s20
          %s211 = smul.addr %s210, 4
          %s212 = scalar_lea.vmem %s0, %s211
          // Predicated region
          $region21: #{explog_loss.1} parent=19 // pred_check
            _
          $region22: #{explog_loss.1} parent=19 // pred_check_branch
            %214 = sbr.rel (0) target = $region24
          $region23: #{explog_loss.1} parent=19 // pred_region
            // Predicated region
            $region25: #{explog_loss.1} parent=23 // pred_check
              _
            $region26: #{explog_loss.1} parent=23 // pred_check_branch
              %216 = sbr.rel target = $region28
            $region27: #{explog_loss.1} parent=23 // pred_region
              // Predicated region
              $region40: #{explog_loss.1} parent=27 // pred_check
                _
              $region41: #{explog_loss.1} parent=27 // pred_check_branch
                %234 = sbr.rel (0) target = $region43
              $region42: #{explog_loss.1} parent=27 // pred_region
                loop: start=0, step=1, limit=1
                $region44: #{explog_loss.1} parent=42 // loop_pre_header
                  _
                $region45: #{explog_loss.1} parent=42 // loop_header
                  %s236 = sphi 0, %s240
                  %p237 = scmp.ge.s32.totalorder %s236, 1
                  %s241 = sphi %s212, %s212
                  %s242 = sphi %s209, %s209
                $region46: #{explog_loss.1} parent=42 // loop_header_branch
                  %239 = sbr.rel (%p237) target = $region50
                $region47: #{explog_loss.1} parent=42 // loop_body
                  _
                $region48: #{explog_loss.1} parent=42 // loop_footer
                  %s240 = sadd.s32 1, %s236
                $region49: #{explog_loss.1} parent=42 // loop_footer_branch
                  %235 = sbr.rel target = $region45
                $region50: #{explog_loss.1} parent=42 // loop_exit
                  _
                %s244 = ssub.s32 16, 1
                loop: start=0, step=1, limit=1
                $region51: #{explog_loss.1} parent=42 // loop_pre_header
                  _
                $region52: #{explog_loss.1} parent=42 // loop_header
                  %s246 = sphi 0, %s250
                  %p247 = scmp.ge.s32.totalorder %s246, 1
                  %s251 = sphi %s212, %s212
                  %s252 = sphi %s209, %s209
                $region53: #{explog_loss.1} parent=42 // loop_header_branch
                  %249 = sbr.rel (%p247) target = $region57
                $region54: #{explog_loss.1} parent=42 // loop_body
                  %v253 = vld [vmem:[%s251] sm:%s244]
                  %254 = vst [vmem:[%s252] sm:%s244] %v253
                  %v255 = vld [vmem:[%s251 + $0x8] sm:%s244]
                  %256 = vst [vmem:[%s252 + $0x4] sm:%s244] %v255
                $region55: #{explog_loss.1} parent=42 // loop_footer
                  %s250 = sadd.s32 1, %s246
                $region56: #{explog_loss.1} parent=42 // loop_footer_branch
                  %245 = sbr.rel target = $region52
                $region57: #{explog_loss.1} parent=42 // loop_exit
                  _
              $region43: #{explog_loss.1} parent=27 // pred_fallthru
                _
            $region28: #{explog_loss.1} parent=23 // pred_fallthru
              _
            // Predicated region
            $region29: #{explog_loss.1} parent=23 // pred_check
              _
            $region30: #{explog_loss.1} parent=23 // pred_check_branch
              %218 = sbr.rel (0) target = $region32
            $region31: #{explog_loss.1} parent=23 // pred_region
              %s220 = ssub.s32 16, 1
              loop: start=0, step=1, limit=1
              $region33: #{explog_loss.1} parent=31 // loop_pre_header
                _
              $region34: #{explog_loss.1} parent=31 // loop_header
                %s222 = sphi 0, %s226
                %p223 = scmp.ge.s32.totalorder %s222, 1
                %s227 = sphi %s212, %s212
                %s228 = sphi %s209, %s209
              $region35: #{explog_loss.1} parent=31 // loop_header_branch
                %225 = sbr.rel (%p223) target = $region39
              $region36: #{explog_loss.1} parent=31 // loop_body
                %v229 = vld [vmem:[%s227] sm:%s220]
                %230 = vst [vmem:[%s228] sm:%s220] %v229
                %v231 = vld [vmem:[%s227 + $0x8] sm:%s220]
                %232 = vst [vmem:[%s228 + $0x4] sm:%s220] %v231
              $region37: #{explog_loss.1} parent=31 // loop_footer
                %s226 = sadd.s32 1, %s222
              $region38: #{explog_loss.1} parent=31 // loop_footer_branch
                %221 = sbr.rel target = $region34
              $region39: #{explog_loss.1} parent=31 // loop_exit
                _
            $region32: #{explog_loss.1} parent=23 // pred_fallthru
              _
          $region24: #{explog_loss.1} parent=19 // pred_fallthru
            _
          %257 = vnop
        $region20: #{explog_loss.1} parent=15 // pred_fallthru
          _
        // Predicated region
        $region58: #{explog_loss.1} parent=15 // pred_check
          %p258 = pneg %p74
        $region59: #{explog_loss.1} parent=15 // pred_check_branch
          %260 = sbr.rel (%p258) target = $region61
        $region60: #{explog_loss.1} parent=15 // pred_region
          %s261 = sand.u32 %s64, 1
          %s262 = sand.u32 %s64, 1
          %s263 = smul.addr %s262, 2
          %s264 = scalar_lea.vmem [#allocation3], %s263
          %s265 = sadd.s32 %s19, %s20
          %s266 = scalar_lea.vmem %s1, %s265
          // Predicated region
          $region62: #{explog_loss.1} parent=60 // pred_check
            _
          $region63: #{explog_loss.1} parent=60 // pred_check_branch
            %268 = sbr.rel (0) target = $region65
          $region64: #{explog_loss.1} parent=60 // pred_region
            // Predicated region
            $region66: #{explog_loss.1} parent=64 // pred_check
              _
            $region67: #{explog_loss.1} parent=64 // pred_check_branch
              %270 = sbr.rel target = $region69
            $region68: #{explog_loss.1} parent=64 // pred_region
              // Predicated region
              $region81: #{explog_loss.1} parent=68 // pred_check
                _
              $region82: #{explog_loss.1} parent=68 // pred_check_branch
                %288 = sbr.rel (0) target = $region84
              $region83: #{explog_loss.1} parent=68 // pred_region
                %s290 = ssub.s32 2, 1
                loop: start=0, step=1, limit=1
                $region85: #{explog_loss.1} parent=83 // loop_pre_header
                  _
                $region86: #{explog_loss.1} parent=83 // loop_header
                  %s292 = sphi 0, %s296
                  %p293 = scmp.ge.s32.totalorder %s292, 1
                  %s297 = sphi %s266, %s266
                  %s298 = sphi %s264, %s264
                $region87: #{explog_loss.1} parent=83 // loop_header_branch
                  %295 = sbr.rel (%p293) target = $region91
                $region88: #{explog_loss.1} parent=83 // loop_body
                  %v299 = vld [vmem:[%s297] sm:%s290]
                  %300 = vst [vmem:[%s298] sm:%s290] %v299
                  %v301 = vld [vmem:[%s297 + $0x2] sm:%s290]
                  %302 = vst [vmem:[%s298 + $0x1] sm:%s290] %v301
                $region89: #{explog_loss.1} parent=83 // loop_footer
                  %s296 = sadd.s32 1, %s292
                $region90: #{explog_loss.1} parent=83 // loop_footer_branch
                  %291 = sbr.rel target = $region86
                $region91: #{explog_loss.1} parent=83 // loop_exit
                  _
              $region84: #{explog_loss.1} parent=68 // pred_fallthru
                _
            $region69: #{explog_loss.1} parent=64 // pred_fallthru
              _
            // Predicated region
            $region70: #{explog_loss.1} parent=64 // pred_check
              _
            $region71: #{explog_loss.1} parent=64 // pred_check_branch
              %272 = sbr.rel (0) target = $region73
            $region72: #{explog_loss.1} parent=64 // pred_region
              %s274 = ssub.s32 2, 1
              loop: start=0, step=1, limit=1
              $region74: #{explog_loss.1} parent=72 // loop_pre_header
                _
              $region75: #{explog_loss.1} parent=72 // loop_header
                %s276 = sphi 0, %s280
                %p277 = scmp.ge.s32.totalorder %s276, 1
                %s281 = sphi %s266, %s266
                %s282 = sphi %s264, %s264
              $region76: #{explog_loss.1} parent=72 // loop_header_branch
                %279 = sbr.rel (%p277) target = $region80
              $region77: #{explog_loss.1} parent=72 // loop_body
                %v283 = vld [vmem:[%s281] sm:%s274]
                %284 = vst [vmem:[%s282] sm:%s274] %v283
                %v285 = vld [vmem:[%s281 + $0x2] sm:%s274]
                %286 = vst [vmem:[%s282 + $0x1] sm:%s274] %v285
              $region78: #{explog_loss.1} parent=72 // loop_footer
                %s280 = sadd.s32 1, %s276
              $region79: #{explog_loss.1} parent=72 // loop_footer_branch
                %275 = sbr.rel target = $region75
              $region80: #{explog_loss.1} parent=72 // loop_exit
                _
            $region73: #{explog_loss.1} parent=64 // pred_fallthru
              _
          $region65: #{explog_loss.1} parent=60 // pred_fallthru
            _
          %303 = vnop
        $region61: #{explog_loss.1} parent=15 // pred_fallthru
          _
      $region16: #{explog_loss.1} parent=5 // pred_fallthru
        _
      %p304 = scmp.le.s32.totalorder 1, %s12
      %p305 = scmp.lt.s32.totalorder %s12, 3
      %p306 = pnand %p304, %p305
      %p307 = pneg %p306
      // Predicated region
      $region92: #{explog_loss.1} parent=5 // pred_check
        _
      $region93: #{explog_loss.1} parent=5 // pred_check_branch
        %309 = sbr.rel (%p306) target = $region95
      $region94: #{explog_loss.1} parent=5 // pred_region
        %s310 = ssub.s32 %s12, 1
        %s311 = sand.u32 %s39, 1
        %s312 = sand.u32 %s39, 1
        %s313 = smul.addr %s312, 8
        %s314 = scalar_lea.vmem [#allocation2], %s313
        // Predicated region
        $region96: #{explog_loss.1} parent=94 // pred_check
          %p315 = pneg %p52
        $region97: #{explog_loss.1} parent=94 // pred_check_branch
          %317 = sbr.rel (%p315) target = $region99
        $region98: #{explog_loss.1} parent=94 // pred_region
          _
        $region99: #{explog_loss.1} parent=94 // pred_fallthru
          _
        %s318 = sand.u32 %s67, 1
        %s319 = sand.u32 %s67, 1
        %s320 = smul.addr %s319, 2
        %s321 = scalar_lea.vmem [#allocation3], %s320
        // Predicated region
        $region100: #{explog_loss.1} parent=94 // pred_check
          %p322 = pneg %p80
        $region101: #{explog_loss.1} parent=94 // pred_check_branch
          %324 = sbr.rel (%p322) target = $region103
        $region102: #{explog_loss.1} parent=94 // pred_region
          _
        $region103: #{explog_loss.1} parent=94 // pred_fallthru
          _
        %s325 = sand.u32 %s39, 1
        %s326 = sand.u32 %s39, 1
        %s327 = smul.addr %s326, 8
        %s328 = scalar_lea.vmem [#allocation2], %s327
        %p329 = pneg %p52
        %p330 = pneg %p49
        %s331 = sand.u32 %s67, 1
        %s332 = sand.u32 %s67, 1
        %s333 = smul.addr %s332, 2
        %s334 = scalar_lea.vmem [#allocation3], %s333
        %p335 = pneg %p80
        %p336 = pneg %p77
        %p337 = pneg %p106
        %p338 = pneg %p103
        %p339 = scmp.lt.s32.totalorder %s21, 1
        %s340 = scalar_select %p339, %s21, 1
        %s341 = smul.addr %s340, 2
        %s342 = smul.addr %s341, 4
        %s343 = scalar_lea.vmem %s2, %s342
        %p344 = pneg %p132
        %p345 = pneg %p129
        %p346 = scmp.lt.s32.totalorder %s21, 1
        %s347 = scalar_select %p346, %s21, 1
        %s348 = smul.addr %s347, 2
        %s349 = smul.addr %s348, 4
        %s350 = scalar_lea.vmem %s3, %s349
        %p351 = pneg %p158
        %p352 = pneg %p155
        %p353 = scmp.lt.s32.totalorder %s21, 1
        %s354 = scalar_select %p353, %s21, 1
        %s355 = smul.addr %s354, 2
        %s356 = smul.addr %s355, 4
        %s357 = scalar_lea.vmem %s4, %s356
        %p358 = pneg %p184
        %p359 = pneg %p181
        %p360 = scmp.lt.s32.totalorder %s21, 1
        %s361 = scalar_select %p360, %s21, 1
        %s362 = smul.addr %s361, 2
        %s363 = scalar_lea.vmem %s5, %s362
        %s364 = sadd.s32 %s21, %s22
        %s365 = sadd.s32 %s21, %s22
        %p366 = scmp.lt.s32.totalorder %s21, 1
        %s367 = scalar_select %p366, %s21, 1
        %s368 = smul.addr %s367, 2
        %s369 = smul.addr %s368, 4
        %s370 = scalar_lea.vmem %s2, %s369
        %p371 = scmp.lt.s32.totalorder %s21, 1
        %s372 = scalar_select %p371, %s21, 1
        %s373 = smul.addr %s372, 2
        %s374 = smul.addr %s373, 4
        %s375 = scalar_lea.vmem %s3, %s374
        %p376 = scmp.lt.s32.totalorder %s21, 1
        %s377 = scalar_select %p376, %s21, 1
        %s378 = smul.addr %s377, 2
        %s379 = smul.addr %s378, 4
        %s380 = scalar_lea.vmem %s4, %s379
        %p381 = scmp.lt.s32.totalorder %s21, 1
        %s382 = scalar_select %p381, %s21, 1
        %s383 = smul.addr %s382, 2
        %s384 = scalar_lea.vmem %s5, %s383
        %p385 = scmp.eq.s32.totalorder %s22, 0
        // Predicated region
        $region104: #{explog_loss.1} parent=94 // pred_check
          %p386 = pneg %p385
        $region105: #{explog_loss.1} parent=94 // pred_check_branch
          %388 = sbr.rel (%p386) target = $region107
        $region106: #{explog_loss.1} parent=94 // pred_region
          %389 = vst [vmem:[%s370] sm:$0xf] 0.0
          %390 = vst [vmem:[%s370 + $0x4] sm:$0xf] 0.0
          %391 = vst [vmem:[%s375] sm:$0xf] 0.0
          %392 = vst [vmem:[%s375 + $0x4] sm:$0xf] 0.0
          %393 = vst [vmem:[%s380] sm:$0xf] 0.0
          %394 = vst [vmem:[%s380 + $0x4] sm:$0xf] 0.0
          %395 = vst [vmem:[%s384] sm:$0x1] 0.0
          %396 = vst [vmem:[%s384 + $0x1] sm:$0x1] 0.0
        $region107: #{explog_loss.1} parent=94 // pred_fallthru
          _
        %v397 = vld [vmem:[%s314] sm:$0xf]
        %v398 = vld [vmem:[%s314 + $0x4] sm:$0xf]
        %v399 = vld [vmem:[%s321] sm:$0x1]
        %v400 = vld [vmem:[%s321 + $0x1] sm:$0x1]
        %vm401 = vcmask 1043456
        %v402 = vsel %vm401, %v397, -inf
        %v403 = vrot.slane %v402, 4
        %v404 = vmax.f32 %v402, %v403
        %v405 = vrot.slane %v404, 2
        %v406 = vmax.f32 %v404, %v405
        %v407 = vrot.slane %v406, 1
        %v408 = vmax.f32 %v406, %v407
        %v409 = vsel %vm401, %v398, -inf
        %v410 = vrot.slane %v409, 4
        %v411 = vmax.f32 %v409, %v410
        %v412 = vrot.slane %v411, 2
        %v413 = vmax.f32 %v411, %v412
        %v414 = vrot.slane %v413, 1
        %v415 = vmax.f32 %v413, %v414
        %v416 = vsub.f32 %v397, %v408
        %v417 = vsub.f32 %v398, %v415
        %v418 = vmul.f32 %v416, 1.442695
        %v419 = vpow.pop %v418
        %v420 = vmul.f32 %v417, 1.442695
        %v421 = vpow.pop %v420
        %v422 = vsel %vm401, %v419, 0.0
        %v423 = vrot.slane %v422, 4
        %v424 = vadd.f32 %v422, %v423
        %v425 = vrot.slane %v424, 2
        %v426 = vadd.f32 %v424, %v425
        %v427 = vrot.slane %v426, 1
        %v428 = vadd.f32 %v426, %v427
        %v429 = vsel %vm401, %v421, 0.0
        %v430 = vrot.slane %v429, 4
        %v431 = vadd.f32 %v429, %v430
        %v432 = vrot.slane %v431, 2
        %v433 = vadd.f32 %v431, %v432
        %v434 = vrot.slane %v433, 1
        %v435 = vadd.f32 %v433, %v434
        %v436 = vlog2.pop %v428
        %v437 = vmul.f32 %v436, 0.6931472
        %v438 = vlog2.pop %v435
        %v439 = vmul.f32 %v438, 0.6931472
        %v440 = vrcp.pop %v428
        %v441 = vrcp.pop %v435
        %v442 = vmul.f32 %v419, %v440
        %v443 = vmul.f32 %v421, %v441
        %v444 = vlaneseq
        %v445 = vshrl.u32 %v444, 7
        %v446 = vlaneseq
        %v447 = vshrl.u32 %v446, 7
        %v448 = vsub.s32 0, %v447
        %v449 = vrot.slane %v399, %v448
        %v450 = vlaneseq
        %v451 = vshrl.u32 %v450, 7
        %v452 = vsub.s32 0, %v451
        %v453 = vrot.slane %v400, %v452
        %vm454 = vcmp.eq.s32.totalorder %v445, %v449
        %vm455 = vcmp.eq.s32.totalorder %v445, %v453
        %v456 = vsel %vm454, %v442, 0.0
        %v457 = vsel %vm455, %v443, 0.0
        %v458 = vsel %vm454, 1, 0
        %v459 = vsel %vm455, 1, 0
        %v460 = vcvt.s32.f32 %v458
        %v461 = vcvt.s32.f32 %v459
        %v462 = vsel %vm454, %v416, 0.0
        %v463 = vsel %vm455, %v417, 0.0
        %v464 = vsel %vm401, %v462, 0.0
        %v465 = vrot.slane %v464, 4
        %v466 = vadd.f32 %v464, %v465
        %v467 = vrot.slane %v466, 2
        %v468 = vadd.f32 %v466, %v467
        %v469 = vrot.slane %v468, 1
        %v470 = vadd.f32 %v468, %v469
        %v471 = vsel %vm401, %v463, 0.0
        %v472 = vrot.slane %v471, 4
        %v473 = vadd.f32 %v471, %v472
        %v474 = vrot.slane %v473, 2
        %v475 = vadd.f32 %v473, %v474
        %v476 = vrot.slane %v475, 1
        %v477 = vadd.f32 %v475, %v476
        %v478 = vsub.f32 %v437, %v470
        %v479 = vsub.f32 %v439, %v477
        %v480 = vld [vmem:[%s370] sm:$0xf]
        %v481 = vld [vmem:[%s370 + $0x4] sm:$0xf]
        %v482 = vadd.f32 %v480, %v456
        %v483 = vadd.f32 %v481, %v457
        %484 = vst [vmem:[%s370] sm:$0xf] %v482
        %485 = vst [vmem:[%s370 + $0x4] sm:$0xf] %v483
        %v486 = vld [vmem:[%s375] sm:$0xf]
        %v487 = vld [vmem:[%s375 + $0x4] sm:$0xf]
        %v488 = vadd.f32 %v486, %v442
        %v489 = vadd.f32 %v487, %v443
        %490 = vst [vmem:[%s375] sm:$0xf] %v488
        %491 = vst [vmem:[%s375 + $0x4] sm:$0xf] %v489
        %v492 = vld [vmem:[%s380] sm:$0xf]
        %v493 = vld [vmem:[%s380 + $0x4] sm:$0xf]
        %v494 = vadd.f32 %v492, %v460
        %v495 = vadd.f32 %v493, %v461
        %496 = vst [vmem:[%s380] sm:$0xf] %v494
        %497 = vst [vmem:[%s380 + $0x4] sm:$0xf] %v495
        %v498 = vld [vmem:[%s384] sm:$0x1]
        %v499 = vld [vmem:[%s384 + $0x1] sm:$0x1]
        %v500 = vadd.f32 %v498, %v478
        %v501 = vadd.f32 %v499, %v479
        %502 = vst [vmem:[%s384] sm:$0x1] %v500
        %503 = vst [vmem:[%s384 + $0x1] sm:$0x1] %v501
        %p504 = scmp.lt.s32.totalorder %s21, 1
        %s505 = scalar_select %p504, %s21, 1
        %s506 = smul.addr %s505, 2
        %s507 = smul.addr %s506, 4
        %s508 = scalar_lea.vmem %s2, %s507
        %p509 = scmp.lt.s32.totalorder %s21, 1
        %s510 = scalar_select %p509, %s21, 1
        %s511 = smul.addr %s510, 2
        %s512 = smul.addr %s511, 4
        %s513 = scalar_lea.vmem %s3, %s512
        %p514 = scmp.lt.s32.totalorder %s21, 1
        %s515 = scalar_select %p514, %s21, 1
        %s516 = smul.addr %s515, 2
        %s517 = smul.addr %s516, 4
        %s518 = scalar_lea.vmem %s4, %s517
        %p519 = scmp.lt.s32.totalorder %s21, 1
        %s520 = scalar_select %p519, %s21, 1
        %s521 = smul.addr %s520, 2
        %s522 = scalar_lea.vmem %s5, %s521
        // Predicated region
        $region108: #{explog_loss.1} parent=94 // pred_check
          %p523 = pneg %p103
        $region109: #{explog_loss.1} parent=94 // pred_check_branch
          %525 = sbr.rel (%p523) target = $region111
        $region110: #{explog_loss.1} parent=94 // pred_region
          _
        $region111: #{explog_loss.1} parent=94 // pred_fallthru
          _
        // Predicated region
        $region112: #{explog_loss.1} parent=94 // pred_check
          %p526 = pneg %p129
        $region113: #{explog_loss.1} parent=94 // pred_check_branch
          %528 = sbr.rel (%p526) target = $region115
        $region114: #{explog_loss.1} parent=94 // pred_region
          _
        $region115: #{explog_loss.1} parent=94 // pred_fallthru
          _
        // Predicated region
        $region116: #{explog_loss.1} parent=94 // pred_check
          %p529 = pneg %p155
        $region117: #{explog_loss.1} parent=94 // pred_check_branch
          %531 = sbr.rel (%p529) target = $region119
        $region118: #{explog_loss.1} parent=94 // pred_region
          _
        $region119: #{explog_loss.1} parent=94 // pred_fallthru
          _
        // Predicated region
        $region120: #{explog_loss.1} parent=94 // pred_check
          %p532 = pneg %p181
        $region121: #{explog_loss.1} parent=94 // pred_check_branch
          %534 = sbr.rel (%p532) target = $region123
        $region122: #{explog_loss.1} parent=94 // pred_region
          _
        $region123: #{explog_loss.1} parent=94 // pred_fallthru
          _
      $region95: #{explog_loss.1} parent=5 // pred_fallthru
        _
      %p535 = scmp.le.s32.totalorder 2, %s12
      // Predicated region
      $region124: #{explog_loss.1} parent=5 // pred_check
        %p536 = pneg %p535
      $region125: #{explog_loss.1} parent=5 // pred_check_branch
        %538 = sbr.rel (%p536) target = $region127
      $region126: #{explog_loss.1} parent=5 // pred_region
        %s539 = ssub.s32 %s12, 2
        // Predicated region
        $region128: #{explog_loss.1} parent=126 // pred_check
          %p540 = pneg %p109
        $region129: #{explog_loss.1} parent=126 // pred_check_branch
          %542 = sbr.rel (%p540) target = $region131
        $region130: #{explog_loss.1} parent=126 // pred_region
          %p543 = scmp.lt.s32.totalorder %s23, 1
          %s544 = scalar_select %p543, %s23, 1
          %s545 = smul.addr %s544, 2
          %s546 = smul.addr %s545, 4
          %s547 = scalar_lea.vmem %s2, %s546
        $region131: #{explog_loss.1} parent=126 // pred_fallthru
          _
        // Predicated region
        $region132: #{explog_loss.1} parent=126 // pred_check
          %p548 = pneg %p135
        $region133: #{explog_loss.1} parent=126 // pred_check_branch
          %550 = sbr.rel (%p548) target = $region135
        $region134: #{explog_loss.1} parent=126 // pred_region
          %p551 = scmp.lt.s32.totalorder %s23, 1
          %s552 = scalar_select %p551, %s23, 1
          %s553 = smul.addr %s552, 2
          %s554 = smul.addr %s553, 4
          %s555 = scalar_lea.vmem %s3, %s554
        $region135: #{explog_loss.1} parent=126 // pred_fallthru
          _
        // Predicated region
        $region136: #{explog_loss.1} parent=126 // pred_check
          %p556 = pneg %p161
        $region137: #{explog_loss.1} parent=126 // pred_check_branch
          %558 = sbr.rel (%p556) target = $region139
        $region138: #{explog_loss.1} parent=126 // pred_region
          %p559 = scmp.lt.s32.totalorder %s23, 1
          %s560 = scalar_select %p559, %s23, 1
          %s561 = smul.addr %s560, 2
          %s562 = smul.addr %s561, 4
          %s563 = scalar_lea.vmem %s4, %s562
        $region139: #{explog_loss.1} parent=126 // pred_fallthru
          _
        // Predicated region
        $region140: #{explog_loss.1} parent=126 // pred_check
          %p564 = pneg %p187
        $region141: #{explog_loss.1} parent=126 // pred_check_branch
          %566 = sbr.rel (%p564) target = $region143
        $region142: #{explog_loss.1} parent=126 // pred_region
          %p567 = scmp.lt.s32.totalorder %s23, 1
          %s568 = scalar_select %p567, %s23, 1
          %s569 = smul.addr %s568, 2
          %s570 = scalar_lea.vmem %s5, %s569
        $region143: #{explog_loss.1} parent=126 // pred_fallthru
          _
      $region127: #{explog_loss.1} parent=5 // pred_fallthru
        _
    $region6: #{explog_loss.1} parent=1 // loop_footer
      %s16 = sadd.s32 1, %s12
    $region7: #{explog_loss.1} parent=1 // loop_footer_branch
      %11 = sbr.rel target = $region3
    $region8: #{explog_loss.1} parent=1 // loop_exit
      _

</llo_original>
